<compile_context>
chip_gen: v5e
topology: v5e:2x2
jax: 0.10.0
libtpu: 0.0.40
codegen_flags: <defaults>
</compile_context>

<pallas_src>
import functools

import jax
import jax.numpy as jnp
from jax.experimental import pallas as pl
from jax.experimental.pallas import tpu as pltpu


# ----------------------------- toy test config ------------------------------
BATCH = 2
SEQ = 8
D_MODEL = 128   # lane-dense (multiple of 128)
D_FF = 512      # lane-dense (multiple of 128), standard 4x expansion


# ------------------------------- fused kernel -------------------------------
def ffn_kernel(x_ref, w1_ref, b1_ref, w2_ref, b2_ref, o_ref, acc_ref):
    """One (row-tile, d_ff-chunk) grid step of y = relu(x @ W1 + b1) @ W2 + b2.

    x_ref  : (tile_m, d_model)  bf16
    w1_ref : (d_model, tk_ff)   bf16  (streamed over the ff axis)
    b1_ref : (1, tk_ff)         f32
    w2_ref : (tk_ff, d_model)   bf16  (streamed over the ff axis)
    b2_ref : (1, d_model)       f32
    o_ref  : (tile_m, d_model)  f32
    acc_ref: (tile_m, d_model)  f32 VMEM accumulator
    """
    j = pl.program_id(1)

    @pl.when(j == 0)
    def _():
        acc_ref[...] = jnp.zeros_like(acc_ref)

    # bf16 MXU matmul, f32 accumulation; bias + ReLU fused in f32 on the VPU.
    h = jnp.dot(x_ref[...], w1_ref[...], preferred_element_type=jnp.float32)
    h = jnp.maximum(h + b1_ref[...], 0.0)
    acc_ref[...] += jnp.dot(h.astype(w2_ref.dtype), w2_ref[...],
                            preferred_element_type=jnp.float32)

    @pl.when(j == pl.num_programs(1) - 1)
    def _():
        # b2 added once per row tile, in the epilogue only.
        o_ref[...] = (acc_ref[...] + b2_ref[...]).astype(o_ref.dtype)


def positionwise_feed_forward(x, w1, b1, w2, b2, *, tile_m=512, tk_ff=512):
    """y = relu(x @ w1 + b1) @ w2 + b2, fused in one Pallas kernel.

    x:  (..., d_model) float32
    w1: (d_model, d_ff), b1: (1, d_ff)
    w2: (d_ff, d_model), b2: (1, d_model)
    """
    orig_shape = x.shape
    d_model = orig_shape[-1]
    d_ff = w1.shape[-1]

    # Flatten leading dims -> one big 2-D row axis (single MXU matmuls/tile).
    x2 = x.reshape(-1, d_model)
    m = x2.shape[0]

    # Feed the MXU bf16; biases and accumulation stay f32.
    x2 = x2.astype(jnp.bfloat16)
    w1 = w1.astype(jnp.bfloat16)
    w2 = w2.astype(jnp.bfloat16)
    b1 = b1.astype(jnp.float32)
    b2 = b2.astype(jnp.float32)

    # Row tile: multiple of 8 (sublane), never larger than m rounded up.
    tile_m = max(8, min(tile_m, pl.cdiv(m, 8) * 8))
    m_pad = pl.cdiv(m, tile_m) * tile_m
    if m_pad != m:
        # TODO(synk): mask a ragged final tile instead of this extra HBM copy.
        x2 = jnp.pad(x2, ((0, m_pad - m), (0, 0)))

    # d_ff chunk: lane-dense multiple of 128 that divides d_ff.
    tk_ff = min(tk_ff, d_ff)
    assert tk_ff % 128 == 0 and d_ff % tk_ff == 0, "tk_ff must divide d_ff (x128)"

    grid = (m_pad // tile_m, d_ff // tk_ff)

    # Advisory cost estimate (weights are re-streamed once per row tile).
    flops = 4 * m_pad * d_model * d_ff
    bytes_accessed = (
        x2.size * x2.dtype.itemsize
        + grid[0] * (w1.size * w1.dtype.itemsize + w2.size * w2.dtype.itemsize)
        + b1.size * b1.dtype.itemsize + b2.size * b2.dtype.itemsize
        + m_pad * d_model * 4)

    out = pl.pallas_call(
        ffn_kernel,
        out_shape=jax.ShapeDtypeStruct((m_pad, d_model), jnp.float32),
        grid_spec=pltpu.PrefetchScalarGridSpec(
            num_scalar_prefetch=0,
            grid=grid,
            in_specs=[
                pl.BlockSpec((tile_m, d_model), lambda i, j: (i, 0)),   # x rows
                pl.BlockSpec((d_model, tk_ff), lambda i, j: (0, j)),    # W1 chunk
                pl.BlockSpec((1, tk_ff), lambda i, j: (0, j)),          # b1 chunk
                pl.BlockSpec((tk_ff, d_model), lambda i, j: (j, 0)),    # W2 chunk
                pl.BlockSpec((1, d_model), lambda i, j: (0, 0)),        # b2
            ],
            out_specs=pl.BlockSpec((tile_m, d_model), lambda i, j: (i, 0)),
            scratch_shapes=[pltpu.VMEM((tile_m, d_model), jnp.float32)],
        ),
        compiler_params=pltpu.CompilerParams(
            dimension_semantics=("parallel", "arbitrary")),
        cost_estimate=pl.CostEstimate(
            flops=flops, transcendentals=0, bytes_accessed=bytes_accessed),
    )(x2, w1, b1, w2, b2)

    if m_pad != m:
        out = out[:m]
    return out.reshape(orig_shape)


# ---------------------------------- main -------------------------------------
if __name__ == "__main__":
    key = jax.random.PRNGKey(0)
    kx, kw1, kb1, kw2, kb2 = jax.random.split(key, 5)

    x = jax.random.normal(kx, (BATCH, SEQ, D_MODEL), dtype=jnp.float32)

    # nn.Linear weights stored pre-transposed as (in, out); biases as (1, out).
    w1 = (0.02 * jax.random.normal(kw1, (D_MODEL, D_FF))).astype(jnp.float32)
    b1 = (0.02 * jax.random.normal(kb1, (1, D_FF))).astype(jnp.float32)
    w2 = (0.02 * jax.random.normal(kw2, (D_FF, D_MODEL))).astype(jnp.float32)
    b2 = (0.02 * jax.random.normal(kb2, (1, D_MODEL))).astype(jnp.float32)

    # Small tiles so the toy shape exercises both grid axes
    # (2 row tiles x 2 d_ff chunks). Production defaults: tile_m=512, tk_ff=512.
    ffn = jax.jit(functools.partial(positionwise_feed_forward,
                                    tile_m=8, tk_ff=256))
    y = ffn(x, w1, b1, w2, b2)
    jax.block_until_ready(y)

    # Pure-JAX f32 reference (same math as the PyTorch module's forward).
    ref = jnp.maximum(x @ w1 + b1, 0.0) @ w2 + b2
    assert y.shape == (BATCH, SEQ, D_MODEL)
    # bf16 MXU inputs with f32 accumulation -> relaxed tolerance vs f32 ref.
    assert jnp.allclose(y, ref, rtol=2e-2, atol=2e-2), "mismatch vs reference"

    print("KERNEL_OK")
</pallas_src>

<mosaic_0001>
module attributes {stable_mosaic.version = 11 : i64} {
  func.func @ffn_kernel(%arg0: i32, %arg1: i32, %arg2: memref<8x128xbf16, #tpu.memory_space<vmem>>, %arg3: memref<128x256xbf16, #tpu.memory_space<vmem>>, %arg4: memref<1x256xf32, #tpu.memory_space<vmem>>, %arg5: memref<256x128xbf16, #tpu.memory_space<vmem>>, %arg6: memref<1x128xf32, #tpu.memory_space<vmem>>, %arg7: memref<8x128xf32, #tpu.memory_space<vmem>>, %arg8: memref<8x128xf32, #tpu.memory_space<vmem>>) attributes {dimension_semantics = [#tpu.dimension_semantics<parallel>, #tpu.dimension_semantics<arbitrary>], iteration_bounds = array<i64: 2, 2>, scalar_prefetch = 0 : i64, scratch_operands = 1 : i64, tpu.core_type = #tpu.core_type<tc>, window_params = [{transform_indices = @transform_0, window_bounds = array<i64: 8, 128>}, {transform_indices = @transform_1, window_bounds = array<i64: 128, 256>}, {transform_indices = @transform_2, window_bounds = array<i64: 1, 256>}, {transform_indices = @transform_3, window_bounds = array<i64: 256, 128>}, {pipeline_mode = #tpu.pipeline_mode<synchronous>, transform_indices = @transform_4, window_bounds = array<i64: 1, 128>}, {transform_indices = @transform_5, window_bounds = array<i64: 8, 128>}]} {
    %c0_i32 = arith.constant 0 : i32
    %0 = arith.cmpi eq, %arg1, %c0_i32 : i32
    %1 = arith.extui %0 : i1 to i32
    %c0_i32_0 = arith.constant 0 : i32
    %2 = arith.cmpi ne, %1, %c0_i32_0 : i32
    scf.if %2 {
      %cst_15 = arith.constant 0.000000e+00 : f32
      %20 = vector.broadcast %cst_15 : f32 to vector<8x128xf32>
      %c0_16 = arith.constant 0 : index
      %c0_17 = arith.constant 0 : index
      %21 = vector.load %arg8[%c0_16, %c0_17] : memref<8x128xf32, #tpu.memory_space<vmem>>, vector<8x128xf32>
      tpu.vector_store %arg8[%c0_16, %c0_17], %20 {strides = array<i32>} : memref<8x128xf32, #tpu.memory_space<vmem>>, vector<8x128xf32>,
    } else {
    }
    %c0 = arith.constant 0 : index
    %c0_1 = arith.constant 0 : index
    %3 = vector.load %arg2[%c0, %c0_1] : memref<8x128xbf16, #tpu.memory_space<vmem>>, vector<8x128xbf16>
    %c0_2 = arith.constant 0 : index
    %c0_3 = arith.constant 0 : index
    %4 = vector.load %arg3[%c0_2, %c0_3] : memref<128x256xbf16, #tpu.memory_space<vmem>>, vector<128x256xbf16>
    %cst = arith.constant dense<0.000000e+00> : vector<8x256xf32>
    %5 = tpu.matmul %3, %4, %cst {dimension_numbers = #tpu.dot_dimension_numbers<[1], [0], [0], [1], [0, 0, 1, 1], [], []>} : vector<8x128xbf16>, vector<128x256xbf16>, vector<8x256xf32> -> vector<8x256xf32>
    %c0_4 = arith.constant 0 : index
    %c0_5 = arith.constant 0 : index
    %6 = vector.load %arg4[%c0_4, %c0_5] : memref<1x256xf32, #tpu.memory_space<vmem>>, vector<1x256xf32>
    %7 = vector.broadcast %6 : vector<1x256xf32> to vector<8x256xf32>
    %8 = arith.addf %5, %7 : vector<8x256xf32>
    %cst_6 = arith.constant 0.000000e+00 : f32
    %9 = vector.broadcast %cst_6 : f32 to vector<8x256xf32>
    %10 = arith.maximumf %8, %9 : vector<8x256xf32>
    %c0_7 = arith.constant 0 : index
    %c0_8 = arith.constant 0 : index
    %11 = vector.load %arg8[%c0_7, %c0_8] : memref<8x128xf32, #tpu.memory_space<vmem>>, vector<8x128xf32>
    %12 = arith.truncf %10 : vector<8x256xf32> to vector<8x256xbf16>
    %c0_9 = arith.constant 0 : index
    %c0_10 = arith.constant 0 : index
    %13 = vector.load %arg5[%c0_9, %c0_10] : memref<256x128xbf16, #tpu.memory_space<vmem>>, vector<256x128xbf16>
    %cst_11 = arith.constant dense<0.000000e+00> : vector<8x128xf32>
    %14 = tpu.matmul %12, %13, %cst_11 {dimension_numbers = #tpu.dot_dimension_numbers<[1], [0], [0], [1], [0, 0, 1, 1], [], []>} : vector<8x256xbf16>, vector<256x128xbf16>, vector<8x128xf32> -> vector<8x128xf32>
    %15 = arith.addf %11, %14 : vector<8x128xf32>
    %c0_12 = arith.constant 0 : index
    %c0_13 = arith.constant 0 : index
    %16 = vector.load %arg8[%c0_12, %c0_13] : memref<8x128xf32, #tpu.memory_space<vmem>>, vector<8x128xf32>
    tpu.vector_store %arg8[%c0_12, %c0_13], %15 {strides = array<i32>} : memref<8x128xf32, #tpu.memory_space<vmem>>, vector<8x128xf32>,
    %c1_i32 = arith.constant 1 : i32
    %17 = arith.cmpi eq, %arg1, %c1_i32 : i32
    %18 = arith.extui %17 : i1 to i32
    %c0_i32_14 = arith.constant 0 : i32
    %19 = arith.cmpi ne, %18, %c0_i32_14 : i32
    scf.if %19 {
      %c0_15 = arith.constant 0 : index
      %c0_16 = arith.constant 0 : index
      %20 = vector.load %arg8[%c0_15, %c0_16] : memref<8x128xf32, #tpu.memory_space<vmem>>, vector<8x128xf32>
      %c0_17 = arith.constant 0 : index
      %c0_18 = arith.constant 0 : index
      %21 = vector.load %arg6[%c0_17, %c0_18] : memref<1x128xf32, #tpu.memory_space<vmem>>, vector<1x128xf32>
      %22 = vector.broadcast %21 : vector<1x128xf32> to vector<8x128xf32>
      %23 = arith.addf %20, %22 : vector<8x128xf32>
      %c0_19 = arith.constant 0 : index
      %c0_20 = arith.constant 0 : index
      %24 = vector.load %arg7[%c0_19, %c0_20] : memref<8x128xf32, #tpu.memory_space<vmem>>, vector<8x128xf32>
      tpu.vector_store %arg7[%c0_19, %c0_20], %23 {strides = array<i32>} : memref<8x128xf32, #tpu.memory_space<vmem>>, vector<8x128xf32>,
    } else {
    }
    return
  }
  func.func @transform_0(%arg0: i32, %arg1: i32) -> (i32, i32) {
    %c0_i32 = arith.constant 0 : i32
    %c0_i32_0 = arith.constant 0 : i32
    return %arg0, %c0_i32 : i32, i32
  }
  func.func @transform_1(%arg0: i32, %arg1: i32) -> (i32, i32) {
    %c0_i32 = arith.constant 0 : i32
    %c0_i32_0 = arith.constant 0 : i32
    return %c0_i32, %arg1 : i32, i32
  }
  func.func @transform_2(%arg0: i32, %arg1: i32) -> (i32, i32) {
    %c0_i32 = arith.constant 0 : i32
    %c0_i32_0 = arith.constant 0 : i32
    return %c0_i32, %arg1 : i32, i32
  }
  func.func @transform_3(%arg0: i32, %arg1: i32) -> (i32, i32) {
    %c0_i32 = arith.constant 0 : i32
    %c0_i32_0 = arith.constant 0 : i32
    return %arg1, %c0_i32 : i32, i32
  }
  func.func @transform_4(%arg0: i32, %arg1: i32) -> (i32, i32) {
    %c0_i32 = arith.constant 0 : i32
    %c0_i32_0 = arith.constant 0 : i32
    %c0_i32_1 = arith.constant 0 : i32
    return %c0_i32, %c0_i32_0 : i32, i32
  }
  func.func @transform_5(%arg0: i32, %arg1: i32) -> (i32, i32) {
    %c0_i32 = arith.constant 0 : i32
    %c0_i32_0 = arith.constant 0 : i32
    return %arg0, %c0_i32 : i32, i32
  }
}

</mosaic_0001>

<llo_original>
// kernel: positionwise_feed_forward.1
$region0: #{positionwise_feed_forward.1}
  #allocation0 [shape = 'u32[]', space=smem, size = 0x4, offset = 0x4, fixed_abs, tag = 'smem constant byte address 0x4 - core index']
  #allocation1 [shape = 'u32[72,128]{1,0:T(1,128)}', space=vmem, size = 0x9000, scoped, tag = 'internal scratch']
  #allocation2 [shape = 'f32[8,128]{1,0:T(8,128)}', space=vmem, size = 0x1000, scoped, tag = 'scratch operand']
  %s0 = inlined_call_operand.vmem [shape: bf16[16,128], index: 0, kind: input, shape index: {}]
  %s1 = inlined_call_operand.vmem [shape: bf16[128,512], index: 1, kind: input, shape index: {}]
  %s2 = inlined_call_operand.vmem [shape: f32[1,512], index: 2, kind: input, shape index: {}]
  %s3 = inlined_call_operand.vmem [shape: bf16[512,128], index: 3, kind: input, shape index: {}]
  %s4 = inlined_call_operand.vmem [shape: f32[1,128], index: 4, kind: input, shape index: {}]
  %s5 = inlined_call_operand.hbm [shape: f32[16,128], index: 5, kind: output, shape index: {}]
  %s6 = sld [smem:[#allocation0]]
  $region99: #{positionwise_feed_forward.1} parent=0
    _
  %s8 = ssub.s32 1, %s6
  %s9 = scalar_select 0, %s8, %s6
  $region1: #{positionwise_feed_forward.1} parent=0
    #allocation3 [shape = 'u8[131072]{0}', space=vmem, size = 0x20000, scoped, tag = 'input window, operand 1']
    #allocation4 [shape = 'u8[8192]{0}', space=vmem, size = 0x2000, scoped, tag = 'output window, operand 0']
    #allocation5 [shape = 's32[2]{0}', space=sflag, size = 0x8, scoped, tag = 'scoped memory for positionwise_feed_forward.1']
    %10 = vsyncpa [#allocation5], 0
    %s11 = scalar_lea.sflag [#allocation5], 1
    %12 = vsyncpa %s11, 0
    loop: start=0, step=1, limit=6
    $region2: #{positionwise_feed_forward.1} parent=1 // loop_pre_header
      _
    $region3: #{positionwise_feed_forward.1} parent=1 // loop_header
      %s14 = sphi 0, %s18
      %p15 = scmp.ge.s32.totalorder %s14, 6
      %s21 = sphi 0, %s33
      %s22 = sphi 0, %s29
      %s23 = sphi 0, %s21
      %s24 = sphi 0, %s22
      %s25 = sphi 0, %s23
      %s26 = sphi 0, %s24
      %s36 = sphi 0, %s38
      %s39 = sphi 0, %s36
      %s40 = sphi 0, %s39
      %s56 = sphi 0, %s40
      %s62 = sphi 0, %s64
      %s65 = sphi 0, %s62
      %s66 = sphi 0, %s65
      %s82 = sphi 0, %s66
      %s88 = sphi 0, %s90
      %s91 = sphi 0, %s88
      %s92 = sphi 0, %s91
      %s108 = sphi 0, %s92
      %s114 = sphi 0, %s116
      %s117 = sphi 0, %s114
      %s118 = sphi 0, %s117
      %s134 = sphi 0, %s118
      %s138 = sphi 0, %s138
      %s140 = sphi 0, %s138
      %s141 = sphi 0, %s140
      %s155 = sphi 0, %s141
      %s161 = sphi 0, %s163
      %s164 = sphi 0, %s161
      %s165 = sphi 0, %s164
      %s181 = sphi 0, %s165
    $region4: #{positionwise_feed_forward.1} parent=1 // loop_header_branch
      %17 = sbr.rel (%p15) target = $region8
    $region5: #{positionwise_feed_forward.1} parent=1 // loop_body
      %s19 = ssub.s32 %s14, 1
      %s20 = ssub.s32 %s14, 2
      %s27 = sadd.s32 1, %s22
      %p28 = scmp.ge.s32.totalorder %s27, 2
      %s29 = scalar_select %p28, 0, %s27
      %s30 = sadd.s32 1, %s21
      %s31 = scalar_select %p28, %s30, %s21
      %p32 = scmp.ge.s32.totalorder %s31, 2
      %s33 = scalar_select %p32, 0, %s31
      %s34 = ssub.s32 %s21, %s33
      %p35 = scmp.eq.s32.totalorder %s34, 0
      %s37 = sadd.s32 %s36, 1
      %s38 = scalar_select %p35, %s36, %s37
      %p41 = pneg %p35
      %p42 = scmp.eq.s32.totalorder %s14, 3
      %p43 = por %p41, %p42
      %p44 = scmp.ne.s32.totalorder %s36, %s39
      %p45 = scmp.eq.s32.totalorder %s14, 0
      %p46 = por %p44, %p45
      %p47 = scmp.ne.s32.totalorder %s36, %s39
      %p48 = scmp.eq.s32.totalorder %s19, 3
      %p49 = por %p47, %p48
      %p50 = scmp.ne.s32.totalorder %s39, %s40
      %p51 = scmp.eq.s32.totalorder %s19, 0
      %p52 = por %p50, %p51
      %p53 = scmp.ne.s32.totalorder %s39, %s40
      %p54 = scmp.eq.s32.totalorder %s20, 3
      %p55 = por %p53, %p54
      %p57 = scmp.ne.s32.totalorder %s40, %s56
      %p58 = scmp.eq.s32.totalorder %s20, 0
      %p59 = por %p57, %p58
      %s60 = ssub.s32 %s22, %s29
      %p61 = scmp.eq.s32.totalorder %s60, 0
      %s63 = sadd.s32 %s62, 1
      %s64 = scalar_select %p61, %s62, %s63
      %p67 = pneg %p61
      %p68 = scmp.eq.s32.totalorder %s14, 3
      %p69 = por %p67, %p68
      %p70 = scmp.ne.s32.totalorder %s62, %s65
      %p71 = scmp.eq.s32.totalorder %s14, 0
      %p72 = por %p70, %p71
      %p73 = scmp.ne.s32.totalorder %s62, %s65
      %p74 = scmp.eq.s32.totalorder %s19, 3
      %p75 = por %p73, %p74
      %p76 = scmp.ne.s32.totalorder %s65, %s66
      %p77 = scmp.eq.s32.totalorder %s19, 0
      %p78 = por %p76, %p77
      %p79 = scmp.ne.s32.totalorder %s65, %s66
      %p80 = scmp.eq.s32.totalorder %s20, 3
      %p81 = por %p79, %p80
      %p83 = scmp.ne.s32.totalorder %s66, %s82
      %p84 = scmp.eq.s32.totalorder %s20, 0
      %p85 = por %p83, %p84
      %s86 = ssub.s32 %s22, %s29
      %p87 = scmp.eq.s32.totalorder %s86, 0
      %s89 = sadd.s32 %s88, 1
      %s90 = scalar_select %p87, %s88, %s89
      %p93 = pneg %p87
      %p94 = scmp.eq.s32.totalorder %s14, 3
      %p95 = por %p93, %p94
      %p96 = scmp.ne.s32.totalorder %s88, %s91
      %p97 = scmp.eq.s32.totalorder %s14, 0
      %p98 = por %p96, %p97
      %p99 = scmp.ne.s32.totalorder %s88, %s91
      %p100 = scmp.eq.s32.totalorder %s19, 3
      %p101 = por %p99, %p100
      %p102 = scmp.ne.s32.totalorder %s91, %s92
      %p103 = scmp.eq.s32.totalorder %s19, 0
      %p104 = por %p102, %p103
      %p105 = scmp.ne.s32.totalorder %s91, %s92
      %p106 = scmp.eq.s32.totalorder %s20, 3
      %p107 = por %p105, %p106
      %p109 = scmp.ne.s32.totalorder %s92, %s108
      %p110 = scmp.eq.s32.totalorder %s20, 0
      %p111 = por %p109, %p110
      %s112 = ssub.s32 %s22, %s29
      %p113 = scmp.eq.s32.totalorder %s112, 0
      %s115 = sadd.s32 %s114, 1
      %s116 = scalar_select %p113, %s114, %s115
      %p119 = pneg %p113
      %p120 = scmp.eq.s32.totalorder %s14, 3
      %p121 = por %p119, %p120
      %p122 = scmp.ne.s32.totalorder %s114, %s117
      %p123 = scmp.eq.s32.totalorder %s14, 0
      %p124 = por %p122, %p123
      %p125 = scmp.ne.s32.totalorder %s114, %s117
      %p126 = scmp.eq.s32.totalorder %s19, 3
      %p127 = por %p125, %p126
      %p128 = scmp.ne.s32.totalorder %s117, %s118
      %p129 = scmp.eq.s32.totalorder %s19, 0
      %p130 = por %p128, %p129
      %p131 = scmp.ne.s32.totalorder %s117, %s118
      %p132 = scmp.eq.s32.totalorder %s20, 3
      %p133 = por %p131, %p132
      %p135 = scmp.ne.s32.totalorder %s118, %s134
      %p136 = scmp.eq.s32.totalorder %s20, 0
      %p137 = por %p135, %p136
      %s139 = sadd.s32 %s138, 1
      %p142 = scmp.eq.s32.totalorder %s14, 3
      %p143 = scmp.ne.s32.totalorder %s138, %s140
      %p144 = scmp.eq.s32.totalorder %s14, 0
      %p145 = por %p143, %p144
      %p146 = scmp.ne.s32.totalorder %s138, %s140
      %p147 = scmp.eq.s32.totalorder %s19, 3
      %p148 = por %p146, %p147
      %p149 = scmp.ne.s32.totalorder %s140, %s141
      %p150 = scmp.eq.s32.totalorder %s19, 0
      %p151 = por %p149, %p150
      %p152 = scmp.ne.s32.totalorder %s140, %s141
      %p153 = scmp.eq.s32.totalorder %s20, 3
      %p154 = por %p152, %p153
      %p156 = scmp.ne.s32.totalorder %s141, %s155
      %p157 = scmp.eq.s32.totalorder %s20, 0
      %p158 = por %p156, %p157
      %s159 = ssub.s32 %s21, %s33
      %p160 = scmp.eq.s32.totalorder %s159, 0
      %s162 = sadd.s32 %s161, 1
      %s163 = scalar_select %p160, %s161, %s162
      %p166 = pneg %p160
      %p167 = scmp.eq.s32.totalorder %s14, 3
      %p168 = por %p166, %p167
      %p169 = scmp.ne.s32.totalorder %s161, %s164
      %p170 = scmp.eq.s32.totalorder %s14, 0
      %p171 = por %p169, %p170
      %p172 = scmp.ne.s32.totalorder %s161, %s164
      %p173 = scmp.eq.s32.totalorder %s19, 3
      %p174 = por %p172, %p173
      %p175 = scmp.ne.s32.totalorder %s164, %s165
      %p176 = scmp.eq.s32.totalorder %s19, 0
      %p177 = por %p175, %p176
      %p178 = scmp.ne.s32.totalorder %s164, %s165
      %p179 = scmp.eq.s32.totalorder %s20, 3
      %p180 = por %p178, %p179
      %p182 = scmp.ne.s32.totalorder %s165, %s181
      %p183 = scmp.eq.s32.totalorder %s20, 0
      %p184 = por %p182, %p183
      %p185 = scmp.le.s32.totalorder 1, %s14
      %p186 = scmp.lt.s32.totalorder %s14, 5
      %p187 = pnand %p185, %p186
      %p188 = pneg %p187
      // Predicated region
      $region9: #{positionwise_feed_forward.1} parent=5 // pred_check
        _
      $region10: #{positionwise_feed_forward.1} parent=5 // pred_check_branch
        %190 = sbr.rel (%p187) target = $region12
      $region11: #{positionwise_feed_forward.1} parent=5 // pred_region
        %s191 = ssub.s32 %s14, 1
        // Predicated region
        $region13: #{positionwise_feed_forward.1} parent=11 // pred_check
          %p192 = pneg %p151
        $region14: #{positionwise_feed_forward.1} parent=11 // pred_check_branch
          %194 = sbr.rel (%p192) target = $region16
        $region15: #{positionwise_feed_forward.1} parent=11 // pred_region
          _
        $region16: #{positionwise_feed_forward.1} parent=11 // pred_fallthru
          _
      $region12: #{positionwise_feed_forward.1} parent=5 // pred_fallthru
        _
      %p195 = scmp.lt.s32.totalorder %s14, 4
      // Predicated region
      $region17: #{positionwise_feed_forward.1} parent=5 // pred_check
        %p196 = pneg %p195
      $region18: #{positionwise_feed_forward.1} parent=5 // pred_check_branch
        %198 = sbr.rel (%p196) target = $region20
      $region19: #{positionwise_feed_forward.1} parent=5 // pred_region
        // Predicated region
        $region21: #{positionwise_feed_forward.1} parent=19 // pred_check
          %p199 = pneg %p46
        $region22: #{positionwise_feed_forward.1} parent=19 // pred_check_branch
          %201 = sbr.rel (%p199) target = $region24
        $region23: #{positionwise_feed_forward.1} parent=19 // pred_region
          %p202 = scmp.lt.s32.totalorder %s21, 1
          %s203 = scalar_select %p202, %s21, 1
          %s204 = smul.addr %s203, 4
          %s205 = scalar_lea.vmem %s0, %s204
        $region24: #{positionwise_feed_forward.1} parent=19 // pred_fallthru
          _
        // Predicated region
        $region25: #{positionwise_feed_forward.1} parent=19 // pred_check
          %p206 = pneg %p72
        $region26: #{positionwise_feed_forward.1} parent=19 // pred_check_branch
          %208 = sbr.rel (%p206) target = $region28
        $region27: #{positionwise_feed_forward.1} parent=19 // pred_region
          %s209 = sand.u32 %s62, 1
          %s210 = sand.u32 %s62, 1
          %s211 = smul.addr %s210, 128
          %s212 = scalar_lea.vmem [#allocation3], %s211
          %s213 = smul.u32 2, %s22
          %s214 = smul.addr %s213, 4
          %s215 = scalar_lea.vmem %s1, %s214
          // Predicated region
          $region29: #{positionwise_feed_forward.1} parent=27 // pred_check
            _
          $region30: #{positionwise_feed_forward.1} parent=27 // pred_check_branch
            %217 = sbr.rel (0) target = $region32
          $region31: #{positionwise_feed_forward.1} parent=27 // pred_region
            // Predicated region
            $region33: #{positionwise_feed_forward.1} parent=31 // pred_check
              _
            $region34: #{positionwise_feed_forward.1} parent=31 // pred_check_branch
              %219 = sbr.rel (0) target = $region36
            $region35: #{positionwise_feed_forward.1} parent=31 // pred_region
              // Predicated region
              $region48: #{positionwise_feed_forward.1} parent=35 // pred_check
                _
              $region49: #{positionwise_feed_forward.1} parent=35 // pred_check_branch
                %265 = sbr.rel (0) target = $region51
              $region50: #{positionwise_feed_forward.1} parent=35 // pred_region
                loop: start=0, step=1, limit=1
                $region52: #{positionwise_feed_forward.1} parent=50 // loop_pre_header
                  _
                $region53: #{positionwise_feed_forward.1} parent=50 // loop_header
                  %s267 = sphi 0, %s271
                  %p268 = scmp.ge.s32.totalorder %s267, 1
                  %s272 = sphi %s215, %s215
                  %s273 = sphi %s212, %s212
                $region54: #{positionwise_feed_forward.1} parent=50 // loop_header_branch
                  %270 = sbr.rel (%p268) target = $region58
                $region55: #{positionwise_feed_forward.1} parent=50 // loop_body
                  %v274 = vld [vmem:[%s272] sm:$0xff]
                  %275 = vst [vmem:[%s273] sm:$0xff] %v274
                  %v276 = vld [vmem:[%s272 + $0x10] sm:$0xff]
                  %277 = vst [vmem:[%s273 + $0x8] sm:$0xff] %v276
                  %v278 = vld [vmem:[%s272 + $0x20] sm:$0xff]
                  %279 = vst [vmem:[%s273 + $0x10] sm:$0xff] %v278
                  %v280 = vld [vmem:[%s272 + $0x30] sm:$0xff]
                  %281 = vst [vmem:[%s273 + $0x18] sm:$0xff] %v280
                  %v282 = vld [vmem:[%s272 + $0x40] sm:$0xff]
                  %283 = vst [vmem:[%s273 + $0x20] sm:$0xff] %v282
                  %v284 = vld [vmem:[%s272 + $0x50] sm:$0xff]
                  %285 = vst [vmem:[%s273 + $0x28] sm:$0xff] %v284
                  %v286 = vld [vmem:[%s272 + $0x60] sm:$0xff]
                  %287 = vst [vmem:[%s273 + $0x30] sm:$0xff] %v286
                  %v288 = vld [vmem:[%s272 + $0x70] sm:$0xff]
                  %289 = vst [vmem:[%s273 + $0x38] sm:$0xff] %v288
                  %v290 = vld [vmem:[%s272 + $0x80] sm:$0xff]
                  %291 = vst [vmem:[%s273 + $0x40] sm:$0xff] %v290
                  %v292 = vld [vmem:[%s272 + $0x90] sm:$0xff]
                  %293 = vst [vmem:[%s273 + $0x48] sm:$0xff] %v292
                  %v294 = vld [vmem:[%s272 + $0xa0] sm:$0xff]
                  %295 = vst [vmem:[%s273 + $0x50] sm:$0xff] %v294
                  %v296 = vld [vmem:[%s272 + $0xb0] sm:$0xff]
                  %297 = vst [vmem:[%s273 + $0x58] sm:$0xff] %v296
                  %v298 = vld [vmem:[%s272 + $0xc0] sm:$0xff]
                  %299 = vst [vmem:[%s273 + $0x60] sm:$0xff] %v298
                  %v300 = vld [vmem:[%s272 + $0xd0] sm:$0xff]
                  %301 = vst [vmem:[%s273 + $0x68] sm:$0xff] %v300
                  %v302 = vld [vmem:[%s272 + $0xe0] sm:$0xff]
                  %303 = vst [vmem:[%s273 + $0x70] sm:$0xff] %v302
                  %v304 = vld [vmem:[%s272 + $0xf0] sm:$0xff]
                  %305 = vst [vmem:[%s273 + $0x78] sm:$0xff] %v304
                $region56: #{positionwise_feed_forward.1} parent=50 // loop_footer
                  %s271 = sadd.s32 1, %s267
                $region57: #{positionwise_feed_forward.1} parent=50 // loop_footer_branch
                  %266 = sbr.rel target = $region53
                $region58: #{positionwise_feed_forward.1} parent=50 // loop_exit
                  _
              $region51: #{positionwise_feed_forward.1} parent=35 // pred_fallthru
                _
              // Predicated region
              $region59: #{positionwise_feed_forward.1} parent=35 // pred_check
                _
              $region60: #{positionwise_feed_forward.1} parent=35 // pred_check_branch
                %307 = sbr.rel target = $region62
              $region61: #{positionwise_feed_forward.1} parent=35 // pred_region
                _
              $region62: #{positionwise_feed_forward.1} parent=35 // pred_fallthru
                _
            $region36: #{positionwise_feed_forward.1} parent=31 // pred_fallthru
              _
            // Predicated region
            $region37: #{positionwise_feed_forward.1} parent=31 // pred_check
              _
            $region38: #{positionwise_feed_forward.1} parent=31 // pred_check_branch
              %221 = sbr.rel target = $region40
            $region39: #{positionwise_feed_forward.1} parent=31 // pred_region
              %s223 = ssub.s32 256, 1
              loop: start=0, step=1, limit=1
              $region41: #{positionwise_feed_forward.1} parent=39 // loop_pre_header
                _
              $region42: #{positionwise_feed_forward.1} parent=39 // loop_header
                %s225 = sphi 0, %s229
                %p226 = scmp.ge.s32.totalorder %s225, 1
                %s230 = sphi %s215, %s215
                %s231 = sphi %s212, %s212
              $region43: #{positionwise_feed_forward.1} parent=39 // loop_header_branch
                %228 = sbr.rel (%p226) target = $region47
              $region44: #{positionwise_feed_forward.1} parent=39 // loop_body
                %v232 = vld [vmem:[%s230] sm:%s223]
                %233 = vst [vmem:[%s231] sm:%s223] %v232
                %v234 = vld [vmem:[%s230 + $0x10] sm:%s223]
                %235 = vst [vmem:[%s231 + $0x8] sm:%s223] %v234
                %v236 = vld [vmem:[%s230 + $0x20] sm:%s223]
                %237 = vst [vmem:[%s231 + $0x10] sm:%s223] %v236
                %v238 = vld [vmem:[%s230 + $0x30] sm:%s223]
                %239 = vst [vmem:[%s231 + $0x18] sm:%s223] %v238
                %v240 = vld [vmem:[%s230 + $0x40] sm:%s223]
                %241 = vst [vmem:[%s231 + $0x20] sm:%s223] %v240
                %v242 = vld [vmem:[%s230 + $0x50] sm:%s223]
                %243 = vst [vmem:[%s231 + $0x28] sm:%s223] %v242
                %v244 = vld [vmem:[%s230 + $0x60] sm:%s223]
                %245 = vst [vmem:[%s231 + $0x30] sm:%s223] %v244
                %v246 = vld [vmem:[%s230 + $0x70] sm:%s223]
                %247 = vst [vmem:[%s231 + $0x38] sm:%s223] %v246
                %v248 = vld [vmem:[%s230 + $0x80] sm:%s223]
                %249 = vst [vmem:[%s231 + $0x40] sm:%s223] %v248
                %v250 = vld [vmem:[%s230 + $0x90] sm:%s223]
                %251 = vst [vmem:[%s231 + $0x48] sm:%s223] %v250
                %v252 = vld [vmem:[%s230 + $0xa0] sm:%s223]
                %253 = vst [vmem:[%s231 + $0x50] sm:%s223] %v252
                %v254 = vld [vmem:[%s230 + $0xb0] sm:%s223]
                %255 = vst [vmem:[%s231 + $0x58] sm:%s223] %v254
                %v256 = vld [vmem:[%s230 + $0xc0] sm:%s223]
                %257 = vst [vmem:[%s231 + $0x60] sm:%s223] %v256
                %v258 = vld [vmem:[%s230 + $0xd0] sm:%s223]
                %259 = vst [vmem:[%s231 + $0x68] sm:%s223] %v258
                %v260 = vld [vmem:[%s230 + $0xe0] sm:%s223]
                %261 = vst [vmem:[%s231 + $0x70] sm:%s223] %v260
                %v262 = vld [vmem:[%s230 + $0xf0] sm:%s223]
                %263 = vst [vmem:[%s231 + $0x78] sm:%s223] %v262
              $region45: #{positionwise_feed_forward.1} parent=39 // loop_footer
                %s229 = sadd.s32 1, %s225
              $region46: #{positionwise_feed_forward.1} parent=39 // loop_footer_branch
                %224 = sbr.rel target = $region42
              $region47: #{positionwise_feed_forward.1} parent=39 // loop_exit
                _
            $region40: #{positionwise_feed_forward.1} parent=31 // pred_fallthru
              _
          $region32: #{positionwise_feed_forward.1} parent=27 // pred_fallthru
            _
          %308 = vnop
        $region28: #{positionwise_feed_forward.1} parent=19 // pred_fallthru
          _
        // Predicated region
        $region63: #{positionwise_feed_forward.1} parent=19 // pred_check
          %p309 = pneg %p98
        $region64: #{positionwise_feed_forward.1} parent=19 // pred_check_branch
          %311 = sbr.rel (%p309) target = $region66
        $region65: #{positionwise_feed_forward.1} parent=19 // pred_region
          %s312 = smul.u32 2, %s22
          %p313 = scmp.lt.s32.totalorder %s312, 3
          %s314 = scalar_select %p313, %s312, 3
          %s315 = scalar_lea.vmem %s2, %s314
          %s316 = smul.u32 2, %s22
        $region66: #{positionwise_feed_forward.1} parent=19 // pred_fallthru
          _
        // Predicated region
        $region67: #{positionwise_feed_forward.1} parent=19 // pred_check
          %p317 = pneg %p124
        $region68: #{positionwise_feed_forward.1} parent=19 // pred_check_branch
          %319 = sbr.rel (%p317) target = $region70
        $region69: #{positionwise_feed_forward.1} parent=19 // pred_region
          %s320 = smul.u32 32, %s22
          %p321 = scmp.lt.s32.totalorder %s320, 63
          %s322 = scalar_select %p321, %s320, 63
          %s323 = smul.addr %s322, 4
          %s324 = scalar_lea.vmem %s3, %s323
          %s325 = smul.u32 32, %s22
        $region70: #{positionwise_feed_forward.1} parent=19 // pred_fallthru
          _
      $region20: #{positionwise_feed_forward.1} parent=5 // pred_fallthru
        _
      %p326 = scmp.le.s32.totalorder 1, %s14
      %p327 = scmp.lt.s32.totalorder %s14, 5
      %p328 = pnand %p326, %p327
      %p329 = pneg %p328
      // Predicated region
      $region71: #{positionwise_feed_forward.1} parent=5 // pred_check
        _
      $region72: #{positionwise_feed_forward.1} parent=5 // pred_check_branch
        %331 = sbr.rel (%p328) target = $region74
      $region73: #{positionwise_feed_forward.1} parent=5 // pred_region
        %s332 = ssub.s32 %s14, 1
        %s333 = sand.u32 %s65, 1
        %s334 = sand.u32 %s65, 1
        %s335 = smul.addr %s334, 128
        %s336 = scalar_lea.vmem [#allocation3], %s335
        // Predicated region
        $region75: #{positionwise_feed_forward.1} parent=73 // pred_check
          %p337 = pneg %p78
        $region76: #{positionwise_feed_forward.1} parent=73 // pred_check_branch
          %339 = sbr.rel (%p337) target = $region78
        $region77: #{positionwise_feed_forward.1} parent=73 // pred_region
          _
        $region78: #{positionwise_feed_forward.1} parent=73 // pred_fallthru
          _
        %p340 = scmp.lt.s32.totalorder %s23, 1
        %s341 = scalar_select %p340, %s23, 1
        %s342 = smul.addr %s341, 4
        %s343 = scalar_lea.vmem %s0, %s342
        %p344 = pneg %p52
        %p345 = pneg %p49
        %s346 = sand.u32 %s65, 1
        %s347 = sand.u32 %s65, 1
        %s348 = smul.addr %s347, 128
        %s349 = scalar_lea.vmem [#allocation3], %s348
        %p350 = pneg %p78
        %p351 = pneg %p75
        %s352 = smul.u32 2, %s24
        %p353 = scmp.lt.s32.totalorder %s352, 3
        %s354 = scalar_select %p353, %s352, 3
        %s355 = scalar_lea.vmem %s2, %s354
        %p356 = pneg %p104
        %p357 = pneg %p101
        %s358 = smul.u32 32, %s24
        %p359 = scmp.lt.s32.totalorder %s358, 63
        %s360 = scalar_select %p359, %s358, 63
        %s361 = smul.addr %s360, 4
        %s362 = scalar_lea.vmem %s3, %s361
        %p363 = pneg %p130
        %p364 = pneg %p127
        %p365 = pneg %p151
        %p366 = pneg %p148
        %p367 = pneg %p177
        %p368 = pneg %p174
        %s369 = sand.u32 %s164, 1
        %s370 = scalar_lea.sflag [#allocation5], %s369
        %s371 = sand.u32 %s164, 1
        %s372 = smul.addr %s371, 8
        %s373 = scalar_lea.vmem [#allocation4], %s372
        %p374 = scmp.lt.s32.totalorder %s23, 1
        %s375 = scalar_select %p374, %s23, 1
        %s376 = smul.addr %s375, 4
        %s377 = scalar_lea.vmem %s0, %s376
        %s378 = smul.u32 2, %s24
        %s379 = smul.u32 2, %s24
        %p380 = scmp.lt.s32.totalorder %s379, 3
        %s381 = scalar_select %p380, %s379, 3
        %s382 = scalar_lea.vmem %s2, %s381
        %s383 = smul.u32 2, %s24
        %s384 = smul.u32 32, %s24
        %p385 = scmp.lt.s32.totalorder %s384, 63
        %s386 = scalar_select %p385, %s384, 63
        %s387 = smul.addr %s386, 4
        %s388 = scalar_lea.vmem %s3, %s387
        %s389 = smul.u32 32, %s24
        %p390 = scmp.eq.s32.totalorder %s24, 0
        // Predicated region
        $region79: #{positionwise_feed_forward.1} parent=73 // pred_check
          %p391 = pneg %p390
        $region80: #{positionwise_feed_forward.1} parent=73 // pred_check_branch
          %393 = sbr.rel (%p391) target = $region82
        $region81: #{positionwise_feed_forward.1} parent=73 // pred_region
          %394 = vst [vmem:[#allocation2] sm:$0xff] 0.0
        $region82: #{positionwise_feed_forward.1} parent=73 // pred_fallthru
          _
        %v395 = vld [vmem:[%s377] sm:$0xf]
        %v396 = vld [vmem:[%s336] sm:$0xff]
        %v397 = vld [vmem:[%s336 + $0x8] sm:$0xff]
        %v398 = vld [vmem:[%s336 + $0x10] sm:$0xff]
        %v399 = vld [vmem:[%s336 + $0x18] sm:$0xff]
        %v400 = vld [vmem:[%s336 + $0x20] sm:$0xff]
        %v401 = vld [vmem:[%s336 + $0x28] sm:$0xff]
        %v402 = vld [vmem:[%s336 + $0x30] sm:$0xff]
        %v403 = vld [vmem:[%s336 + $0x38] sm:$0xff]
        %v404 = vld [vmem:[%s336 + $0x40] sm:$0xff]
        %v405 = vld [vmem:[%s336 + $0x48] sm:$0xff]
        %v406 = vld [vmem:[%s336 + $0x50] sm:$0xff]
        %v407 = vld [vmem:[%s336 + $0x58] sm:$0xff]
        %v408 = vld [vmem:[%s336 + $0x60] sm:$0xff]
        %v409 = vld [vmem:[%s336 + $0x68] sm:$0xff]
        %v410 = vld [vmem:[%s336 + $0x70] sm:$0xff]
        %v411 = vld [vmem:[%s336 + $0x78] sm:$0xff]
        %v412 = vld [vmem:[%s382] sm:$0x3]
        %v414 = vperm.slane %v412, 0
        %v415 = vperm.slane %v412, 1
        %v434 = vunpack.c.l.b16 %v396
        %v435 = vunpack.c.h.b16 %v396
        %v436 = vunpack.c.l.b16 %v397
        %v437 = vunpack.c.h.b16 %v397
        %v438 = vunpack.c.l.b16 %v398
        %v439 = vunpack.c.h.b16 %v398
        %v440 = vunpack.c.l.b16 %v399
        %v441 = vunpack.c.h.b16 %v399
        %v442 = vunpack.c.l.b16 %v400
        %v443 = vunpack.c.h.b16 %v400
        %v444 = vunpack.c.l.b16 %v401
        %v445 = vunpack.c.h.b16 %v401
        %v446 = vunpack.c.l.b16 %v402
        %v447 = vunpack.c.h.b16 %v402
        %v448 = vunpack.c.l.b16 %v403
        %v449 = vunpack.c.h.b16 %v403
        %v450 = vunpack.c.l.b16 %v404
        %v451 = vunpack.c.h.b16 %v404
        %v452 = vunpack.c.l.b16 %v405
        %v453 = vunpack.c.h.b16 %v405
        %v454 = vunpack.c.l.b16 %v406
        %v455 = vunpack.c.h.b16 %v406
        %v456 = vunpack.c.l.b16 %v407
        %v457 = vunpack.c.h.b16 %v407
        %v458 = vunpack.c.l.b16 %v408
        %v459 = vunpack.c.h.b16 %v408
        %v460 = vunpack.c.l.b16 %v409
        %v461 = vunpack.c.h.b16 %v409
        %v462 = vunpack.c.l.b16 %v410
        %v463 = vunpack.c.h.b16 %v410
        %v464 = vunpack.c.l.b16 %v411
        %v465 = vunpack.c.h.b16 %v411
        %v466 = vpack.c.b16 %v436, %v434
        %v467 = vpack.c.b16 %v437, %v435
        %v468 = vpack.c.b16 %v440, %v438
        %v469 = vpack.c.b16 %v441, %v439
        %v470 = vpack.c.b16 %v444, %v442
        %v471 = vpack.c.b16 %v445, %v443
        %v472 = vpack.c.b16 %v448, %v446
        %v473 = vpack.c.b16 %v449, %v447
        %v474 = vpack.c.b16 %v452, %v450
        %v475 = vpack.c.b16 %v453, %v451
        %v476 = vpack.c.b16 %v456, %v454
        %v477 = vpack.c.b16 %v457, %v455
        %v478 = vpack.c.b16 %v460, %v458
        %v479 = vpack.c.b16 %v461, %v459
        %v480 = vpack.c.b16 %v464, %v462
        %v481 = vpack.c.b16 %v465, %v463
        %498 = vmatpush.bf16.msra.mxu0 %v480
        %499 = vmatpush.bf16.msra.mxu0 %v478
        %500 = vmatpush.bf16.msra.mxu0 %v476
        %501 = vmatpush.bf16.msra.mxu0 %v474
        %502 = vmatpush.bf16.msra.mxu0 %v472
        %503 = vmatpush.bf16.msra.mxu0 %v470
        %504 = vmatpush.bf16.msra.mxu0 %v468
        %505 = vmatpush.bf16.msra.mxu0 %v466
        %506 = vmatmul.bf16.gmra.mxu0 %v395
        %v507 = vpop.f32.mrf.mxu0
        %v508 = vadd.f32 %v414, %v507
        %v509 = vpop.f32.mrf.mxu0
        %510 = vdwg.mxu0
        %511 = vmatpush.bf16.msra.mxu0 %v481
        %512 = vmatpush.bf16.msra.mxu0 %v479
        %513 = vmatpush.bf16.msra.mxu0 %v477
        %514 = vmatpush.bf16.msra.mxu0 %v475
        %515 = vmatpush.bf16.msra.mxu0 %v473
        %516 = vmatpush.bf16.msra.mxu0 %v471
        %517 = vmatpush.bf16.msra.mxu0 %v469
        %518 = vmatpush.bf16.msra.mxu0 %v467
        %519 = vmatmul.bf16.gmra.mxu0 %v395
        %v520 = vpop.f32.mrf.mxu0
        %v521 = vadd.f32 %v415, %v520
        %v522 = vpop.f32.mrf.mxu0
        %523 = vdwg.mxu0
        %v524 = vmax.f32 %v508, 0.0
        %v525 = vmax.f32 %v521, 0.0
        %v526 = vld [vmem:[#allocation2] sm:$0xff]
        %v527 = vpack.c.bf16 %v524, %v524
        %v528 = vpack.c.bf16 %v525, %v525
        %v529 = vld [vmem:[%s388] sm:$0xf]
        %v530 = vld [vmem:[%s388 + $0x4] sm:$0xf]
        %v531 = vld [vmem:[%s388 + $0x8] sm:$0xf]
        %v532 = vld [vmem:[%s388 + $0xc] sm:$0xf]
        %v533 = vld [vmem:[%s388 + $0x10] sm:$0xf]
        %v534 = vld [vmem:[%s388 + $0x14] sm:$0xf]
        %v535 = vld [vmem:[%s388 + $0x18] sm:$0xf]
        %v536 = vld [vmem:[%s388 + $0x1c] sm:$0xf]
        %v537 = vld [vmem:[%s388 + $0x20] sm:$0xf]
        %v538 = vld [vmem:[%s388 + $0x24] sm:$0xf]
        %v539 = vld [vmem:[%s388 + $0x28] sm:$0xf]
        %v540 = vld [vmem:[%s388 + $0x2c] sm:$0xf]
        %v541 = vld [vmem:[%s388 + $0x30] sm:$0xf]
        %v542 = vld [vmem:[%s388 + $0x34] sm:$0xf]
        %v543 = vld [vmem:[%s388 + $0x38] sm:$0xf]
        %v544 = vld [vmem:[%s388 + $0x3c] sm:$0xf]
        %v545 = vld [vmem:[%s388 + $0x40] sm:$0xf]
        %v546 = vld [vmem:[%s388 + $0x44] sm:$0xf]
        %v547 = vld [vmem:[%s388 + $0x48] sm:$0xf]
        %v548 = vld [vmem:[%s388 + $0x4c] sm:$0xf]
        %v549 = vld [vmem:[%s388 + $0x50] sm:$0xf]
        %v550 = vld [vmem:[%s388 + $0x54] sm:$0xf]
        %v551 = vld [vmem:[%s388 + $0x58] sm:$0xf]
        %v552 = vld [vmem:[%s388 + $0x5c] sm:$0xf]
        %v553 = vld [vmem:[%s388 + $0x60] sm:$0xf]
        %v554 = vld [vmem:[%s388 + $0x64] sm:$0xf]
        %v555 = vld [vmem:[%s388 + $0x68] sm:$0xf]
        %v556 = vld [vmem:[%s388 + $0x6c] sm:$0xf]
        %v557 = vld [vmem:[%s388 + $0x70] sm:$0xf]
        %v558 = vld [vmem:[%s388 + $0x74] sm:$0xf]
        %v559 = vld [vmem:[%s388 + $0x78] sm:$0xf]
        %v560 = vld [vmem:[%s388 + $0x7c] sm:$0xf]
        %v593 = vunpack.c.l.b16 %v529
        %v594 = vunpack.c.l.b16 %v530
        %v595 = vunpack.c.l.b16 %v531
        %v596 = vunpack.c.l.b16 %v532
        %v597 = vunpack.c.l.b16 %v533
        %v598 = vunpack.c.l.b16 %v534
        %v599 = vunpack.c.l.b16 %v535
        %v600 = vunpack.c.l.b16 %v536
        %v601 = vunpack.c.l.b16 %v537
        %v602 = vunpack.c.l.b16 %v538
        %v603 = vunpack.c.l.b16 %v539
        %v604 = vunpack.c.l.b16 %v540
        %v605 = vunpack.c.l.b16 %v541
        %v606 = vunpack.c.l.b16 %v542
        %v607 = vunpack.c.l.b16 %v543
        %v608 = vunpack.c.l.b16 %v544
        %v609 = vunpack.c.l.b16 %v545
        %v610 = vunpack.c.l.b16 %v546
        %v611 = vunpack.c.l.b16 %v547
        %v612 = vunpack.c.l.b16 %v548
        %v613 = vunpack.c.l.b16 %v549
        %v614 = vunpack.c.l.b16 %v550
        %v615 = vunpack.c.l.b16 %v551
        %v616 = vunpack.c.l.b16 %v552
        %v617 = vunpack.c.l.b16 %v553
        %v618 = vunpack.c.l.b16 %v554
        %v619 = vunpack.c.l.b16 %v555
        %v620 = vunpack.c.l.b16 %v556
        %v621 = vunpack.c.l.b16 %v557
        %v622 = vunpack.c.l.b16 %v558
        %v623 = vunpack.c.l.b16 %v559
        %v624 = vunpack.c.l.b16 %v560
        %v625 = vpack.c.b16 %v594, %v593
        %v626 = vpack.c.b16 %v596, %v595
        %v627 = vpack.c.b16 %v598, %v597
        %v628 = vpack.c.b16 %v600, %v599
        %v629 = vpack.c.b16 %v602, %v601
        %v630 = vpack.c.b16 %v604, %v603
        %v631 = vpack.c.b16 %v606, %v605
        %v632 = vpack.c.b16 %v608, %v607
        %v633 = vpack.c.b16 %v610, %v609
        %v634 = vpack.c.b16 %v612, %v611
        %v635 = vpack.c.b16 %v614, %v613
        %v636 = vpack.c.b16 %v616, %v615
        %v637 = vpack.c.b16 %v618, %v617
        %v638 = vpack.c.b16 %v620, %v619
        %v639 = vpack.c.b16 %v622, %v621
        %v640 = vpack.c.b16 %v624, %v623
        %657 = vmatpush.bf16.msra.mxu0 %v632
        %658 = vmatpush.bf16.msra.mxu0 %v631
        %659 = vmatpush.bf16.msra.mxu0 %v630
        %660 = vmatpush.bf16.msra.mxu0 %v629
        %661 = vmatpush.bf16.msra.mxu0 %v628
        %662 = vmatpush.bf16.msra.mxu0 %v627
        %663 = vmatpush.bf16.msra.mxu0 %v626
        %664 = vmatpush.bf16.msra.mxu0 %v625
        %665 = vmatmul.bf16.gmra.mxu0 %v527
        %v666 = vpop.f32.mrf.mxu0
        %v667 = vadd.f32 0.0, %v666
        %v668 = vpop.f32.mrf.mxu0
        %669 = vdwg.mxu0
        %670 = vmatpush.bf16.msra.mxu0 %v640
        %671 = vmatpush.bf16.msra.mxu0 %v639
        %672 = vmatpush.bf16.msra.mxu0 %v638
        %673 = vmatpush.bf16.msra.mxu0 %v637
        %674 = vmatpush.bf16.msra.mxu0 %v636
        %675 = vmatpush.bf16.msra.mxu0 %v635
        %676 = vmatpush.bf16.msra.mxu0 %v634
        %677 = vmatpush.bf16.msra.mxu0 %v633
        %678 = vmatmul.bf16.gmra.mxu0 %v528
        %v679 = vpop.f32.mrf.mxu0
        %v680 = vadd.f32 %v667, %v679
        %v681 = vpop.f32.mrf.mxu0
        %682 = vdwg.mxu0
        %v683 = vadd.f32 %v526, %v680
        %684 = vst [vmem:[#allocation2] sm:$0xff] %v683
        %p685 = scmp.eq.s32.totalorder %s24, 1
        // Predicated region
        $region83: #{positionwise_feed_forward.1} parent=73 // pred_check
          %p686 = pneg %p685
        $region84: #{positionwise_feed_forward.1} parent=73 // pred_check_branch
          %688 = sbr.rel (%p686) target = $region86
        $region85: #{positionwise_feed_forward.1} parent=73 // pred_region
          %v689 = vld [vmem:[#allocation2] sm:$0xff]
          %v690 = vld [vmem:[%s4] sm:$0x1]
          %v692 = vperm.slane %v690, 0
          %v694 = vadd.f32 %v689, %v692
          %695 = vst [vmem:[%s373] sm:$0xff] %v694
        $region86: #{positionwise_feed_forward.1} parent=73 // pred_fallthru
          _
        %s696 = sand.u32 %s164, 1
        %s697 = scalar_lea.sflag [#allocation5], %s696
        %s698 = sand.u32 %s164, 1
        %s699 = smul.addr %s698, 8
        %s700 = scalar_lea.vmem [#allocation4], %s699
        // Predicated region
        $region87: #{positionwise_feed_forward.1} parent=73 // pred_check
          %p701 = pneg %p174
        $region88: #{positionwise_feed_forward.1} parent=73 // pred_check_branch
          %703 = sbr.rel (%p701) target = $region90
        $region89: #{positionwise_feed_forward.1} parent=73 // pred_region
          %705 = vsyncadd %s697, 0
          %s706 = smul.addr %s23, 8
          %s707 = scalar_lea.hbm %s5, %s706
          %s709 = sshll.u32 %s700, 4
          %s710 = int_to_ptr.vmem [resolvable:$true] %s709
          %s711 = sshll.u32 %s707, 4
          %s712 = int_to_ptr.hbm [resolvable:$true] %s711
          %714 = dma.vmem_to_hbm [thread:$0]  %s710, 128, %s712, %s697
        $region90: #{positionwise_feed_forward.1} parent=73 // pred_fallthru
          _
      $region74: #{positionwise_feed_forward.1} parent=5 // pred_fallthru
        _
      %p715 = scmp.le.s32.totalorder 2, %s14
      // Predicated region
      $region91: #{positionwise_feed_forward.1} parent=5 // pred_check
        %p716 = pneg %p715
      $region92: #{positionwise_feed_forward.1} parent=5 // pred_check_branch
        %718 = sbr.rel (%p716) target = $region94
      $region93: #{positionwise_feed_forward.1} parent=5 // pred_region
        %s719 = ssub.s32 %s14, 2
        // Predicated region
        $region95: #{positionwise_feed_forward.1} parent=93 // pred_check
          %p720 = pneg %p180
        $region96: #{positionwise_feed_forward.1} parent=93 // pred_check_branch
          %722 = sbr.rel (%p720) target = $region98
        $region97: #{positionwise_feed_forward.1} parent=93 // pred_region
          %s723 = sand.u32 %s165, 1
          %s724 = scalar_lea.sflag [#allocation5], %s723
          %s725 = sand.u32 %s165, 1
          %s726 = smul.addr %s725, 8
          %s727 = scalar_lea.vmem [#allocation4], %s726
          %729 = dma.done %s724, 128
        $region98: #{positionwise_feed_forward.1} parent=93 // pred_fallthru
          _
      $region94: #{positionwise_feed_forward.1} parent=5 // pred_fallthru
        _
    $region6: #{positionwise_feed_forward.1} parent=1 // loop_footer
      %s18 = sadd.s32 1, %s14
    $region7: #{positionwise_feed_forward.1} parent=1 // loop_footer_branch
      %13 = sbr.rel target = $region3
    $region8: #{positionwise_feed_forward.1} parent=1 // loop_exit
      _
    %730 = vsyncpa [#allocation5], 1
    %s731 = scalar_lea.sflag [#allocation5], 1
    %732 = vsyncpa %s731, 1

</llo_original>
